<compile_context>
chip_gen: v5e
topology: v5e:2x2
jax: 0.10.0
libtpu: 0.0.40
codegen_flags: <defaults>
</compile_context>

<pallas_src>
import math
from functools import partial

import jax
import jax.numpy as jnp
from jax.experimental import pallas as pl
from jax.experimental.pallas import tpu as pltpu


def _pair(v):
    return tuple(v) if isinstance(v, (tuple, list)) else (v, v)


def _round_up(x, m):
    return ((x + m - 1) // m) * m


_K_TILE = 1024                      # lane-aligned K tile for the calibration matmul
_VMEM_SOFT = 12 * 1024 * 1024       # only raise the scoped VMEM limit above this


# ----------------------------------------------------------------------------
# linear_quantize (float-return variant).  Used only by the pure-JAX reference
# in the self-test; the kernels implement the algebraically-factored
# (integer-domain) equivalent.
# ----------------------------------------------------------------------------
def _quantize(x, sf, bits):
    if bits == 1:
        return jnp.sign(x) - 1.0
    bound = 2.0 ** (bits - 1)
    scale = 2.0 ** (bits - 1) / 2.0 ** sf
    y = jnp.clip(jnp.round(x * scale), -bound, bound - 1.0)
    return y * (2.0 ** sf / 2.0 ** (bits - 1))


# ----------------------------------------------------------------------------
# Compiler params helper: generation-aware VMEM limit.
# ----------------------------------------------------------------------------
def _compiler_params(semantics, est_bytes):
    kw = dict(dimension_semantics=semantics)
    if est_bytes > _VMEM_SOFT:
        try:
            cap = pltpu.get_tpu_info().vmem_capacity_bytes
        except Exception:                      # pragma: no cover - safe fallback
            cap = 64 * 1024 * 1024             # v7x physical VMEM (smallest)
        kw["vmem_limit_bytes"] = int(min(max(2 * est_bytes, 16 * 1024 * 1024),
                                         int(cap * 0.9)))
    return pltpu.CompilerParams(**kw)


# ----------------------------------------------------------------------------
# Calibration kernel: bf16 MXU matmul with a K reduction grid axis and an f32
# accumulator (init at k==0, bias+store at k==last).
# ----------------------------------------------------------------------------
def _conv_matmul_kernel(a_ref, w_ref, b_ref, o_ref, acc_ref, *, has_bias):
    # a_ref: (tm, tk) bf16   w_ref: (tk, O_pad) bf16
    # b_ref: (1, O_pad) f32  o_ref: (tm, O_pad) f32  acc_ref: (tm, O_pad) f32
    k = pl.program_id(2)

    @pl.when(k == 0)
    def _():
        acc_ref[...] = jnp.zeros_like(acc_ref)

    acc_ref[...] += jnp.dot(a_ref[...], w_ref[...],
                            preferred_element_type=jnp.float32)

    @pl.when(k == pl.num_programs(2) - 1)
    def _():
        acc = acc_ref[...]
        if has_bias:
            acc = acc + b_ref[...]
        o_ref[...] = acc.astype(o_ref.dtype)


# ----------------------------------------------------------------------------
# Quantized kernel: per output channel, stay in the native (sublane=tm,
# lane=K) layout.  Weight / bias are pre-scaled into the integer domain
# (w *= 2^(bits-1)/2^sf), so per-product work is round + 2 clips; the inverse
# scale is applied once per output element at the end.  One lane-dense
# (tm, O_pad) store per tile.
# ----------------------------------------------------------------------------
def _conv_quant_kernel(a_ref, w_ref, b_ref, o_ref, *, bits, inv_scale,
                       has_bias, og, o_pad):
    # a_ref: (tm, K) f32           w_ref: (O_c, K) f32 (pre-scaled, rows >= og zero)
    # b_ref: (1, O_pad) f32 (pre-scaled)    o_ref: (tm, O_pad) f32
    tm = a_ref.shape[0]
    a = a_ref[...]                                  # load the tile once

    if bits > 1:
        bound = 2.0 ** (bits - 1)
        lo, hi = -bound, bound - 1.0

    cols = []
    # Static Python loop: per-channel work is rank-2, no (tm, O, K) outer
    # product is ever materialized.  TODO(synk): for very large per-group O
    # switch to lax.fori_loop over 8-channel strips + a VMEM scratch.
    for o in range(og):
        w_row = w_ref[o:o + 1, :]                   # (1, K) sublane-broadcast
        prod = a * w_row                            # (tm, K)
        if bits == 1:
            q = jnp.sign(prod) - 1.0
        else:
            q = jnp.clip(jnp.round(prod), lo, hi)   # integer-domain per-product q
        cols.append(jnp.sum(q, axis=-1, keepdims=True))   # XLU lane reduce -> (tm,1)

    t = jnp.concatenate(cols, axis=-1)              # (tm, og), integer-valued
    if bits == 1:
        t = jnp.sign(t) - 1.0
        if has_bias:
            t = jnp.sign(t + b_ref[0:1, 0:og]) - 1.0
        out = t
    else:
        t = jnp.clip(t, lo, hi)                     # quantize of the K-sum
        if has_bias:
            t = jnp.clip(jnp.round(t + b_ref[0:1, 0:og]), lo, hi)
        out = t * inv_scale                         # back to real domain, once

    if o_pad > og:                                  # fold zero tail into the store
        out = jnp.concatenate(
            [out, jnp.zeros((tm, o_pad - og), jnp.float32)], axis=-1)
    o_ref[...] = out.astype(o_ref.dtype)            # single lane-dense store


# ----------------------------------------------------------------------------
# pallas_call wrappers: grid = (groups, M tiles [, K tiles])
# ----------------------------------------------------------------------------
def _conv_pallas_cal(A, W, B2, *, has_bias, tm, tk):
    """A: (G, M, Kp) bf16.  W: (G, Kp, O_pad) bf16.  B2: (G, 1, O_pad) f32."""
    G, M, Kp = A.shape
    O_pad = B2.shape[-1]
    grid = (G, pl.cdiv(M, tm), pl.cdiv(Kp, tk))

    # 2x double-buffering for every pipelined block + the accumulator scratch.
    est = (2 * (tm * tk * A.dtype.itemsize
                + tk * O_pad * W.dtype.itemsize
                + O_pad * 4
                + tm * O_pad * 4)
           + tm * O_pad * 4)

    return pl.pallas_call(
        partial(_conv_matmul_kernel, has_bias=has_bias),
        out_shape=jax.ShapeDtypeStruct((G, M, O_pad), jnp.float32),
        grid_spec=pltpu.PrefetchScalarGridSpec(
            num_scalar_prefetch=0,
            grid=grid,
            in_specs=[
                pl.BlockSpec((None, tm, tk), lambda g, i, k: (g, i, k)),
                pl.BlockSpec((None, tk, O_pad), lambda g, i, k: (g, k, 0)),
                pl.BlockSpec((None, 1, O_pad), lambda g, i, k: (g, 0, 0)),
            ],
            out_specs=pl.BlockSpec((None, tm, O_pad), lambda g, i, k: (g, i, 0)),
            scratch_shapes=[pltpu.VMEM((tm, O_pad), jnp.float32)],
        ),
        compiler_params=_compiler_params(("parallel", "parallel", "arbitrary"), est),
    )(A, W, B2)


def _conv_pallas_quant(A, W, B2, *, bits, sf, has_bias, tm, og):
    """A: (G, M, K) f32.  W: (G, O_c, K) f32 pre-scaled.  B2: (G, 1, O_pad) f32."""
    G, M, K = A.shape
    O_c = W.shape[1]
    O_pad = B2.shape[-1]
    grid = (G, pl.cdiv(M, tm))
    inv_scale = (2.0 ** sf) / (2.0 ** (bits - 1)) if bits > 1 else 1.0

    est = (2 * (tm * K * 4 + O_c * K * 4 + O_pad * 4 + tm * O_pad * 4)
           + 2 * tm * K * 4)                     # a tile + one transient product

    return pl.pallas_call(
        partial(_conv_quant_kernel, bits=bits, inv_scale=inv_scale,
                has_bias=has_bias, og=og, o_pad=O_pad),
        out_shape=jax.ShapeDtypeStruct((G, M, O_pad), jnp.float32),
        grid_spec=pltpu.PrefetchScalarGridSpec(
            num_scalar_prefetch=0,
            grid=grid,
            in_specs=[
                pl.BlockSpec((None, tm, K), lambda g, i: (g, i, 0)),
                pl.BlockSpec((None, O_c, K), lambda g, i: (g, 0, 0)),
                pl.BlockSpec((None, 1, O_pad), lambda g, i: (g, 0, 0)),
            ],
            out_specs=pl.BlockSpec((None, tm, O_pad), lambda g, i: (g, i, 0)),
        ),
        compiler_params=_compiler_params(("parallel", "parallel"), est),
    )(A, W, B2)


# ----------------------------------------------------------------------------
# im2col, built directly in (M, K) row-major order from an NHWC view.
# K ordering = (kh, kw, c-within-group).
# TODO(synk): fuse patch extraction into the kernel (manual DMA of padded NHWC
# row bands) to avoid the kh*kw x HBM blow-up on v5e/v6e.
# ----------------------------------------------------------------------------
def _im2col_grouped(x, kh, kw, stride, padding, dilation, groups, dtype):
    B, C, H, W = x.shape
    sh, sw = stride
    ph, pw = padding
    dh, dw = dilation
    xp = jnp.pad(jnp.transpose(x, (0, 2, 3, 1)).astype(dtype),
                 ((0, 0), (ph, ph), (pw, pw), (0, 0)))          # NHWC, padded
    Hp, Wp = H + 2 * ph, W + 2 * pw
    out_h = (Hp - (dh * (kh - 1) + 1)) // sh + 1
    out_w = (Wp - (dw * (kw - 1) + 1)) // sw + 1
    patches = []
    for i in range(kh):
        for j in range(kw):
            patches.append(
                xp[:, i * dh: i * dh + sh * (out_h - 1) + 1: sh,
                      j * dw: j * dw + sw * (out_w - 1) + 1: sw, :])  # (B,oh,ow,C)
    cs = C // groups
    per_group = []
    for g in range(groups):
        col = jnp.concatenate([p[..., g * cs:(g + 1) * cs] for p in patches],
                              axis=-1)                          # (B,oh,ow,kh*kw*cs)
        per_group.append(col.reshape(B * out_h * out_w, kh * kw * cs))
    A = jnp.stack(per_group, axis=0)                            # (G, M, K)
    return A, out_h, out_w


# ----------------------------------------------------------------------------
# get_scalling_factor — max / top_k quantile (no device-wide sort).  Host sync
# is intentional and matches the torch calibration behavior.
# ----------------------------------------------------------------------------
def get_scalling_factor(output, overflow_rate):
    abs_flat = jnp.abs(output).reshape(-1)
    split_idx = int(overflow_rate * abs_flat.shape[0])
    if split_idx <= 0:
        v = float(jnp.max(abs_flat))
    else:
        topk = jax.lax.top_k(abs_flat, split_idx + 1)[0]
        v = float(topk[split_idx])
    return math.ceil(math.log2(v + 1e-12))


# ----------------------------------------------------------------------------
# Module
# ----------------------------------------------------------------------------
class Conv2dQuant:
    def __init__(self, in_channels, out_channels, kernel_size, bits, sf=None,
                 stride=1, padding=0, dilation=1, groups=1, bias=True,
                 padding_mode='zeros', overflow_rate=0.0, counter=10, *, key):
        if in_channels % groups != 0:
            raise ValueError('in_channels must be divisible by groups')
        if out_channels % groups != 0:
            raise ValueError('out_channels must be divisible by groups')
        self._counter = counter
        self.in_channels = in_channels
        self.out_channels = out_channels
        self.kernel_size = kernel_size
        self.sf = sf
        self.bits = bits
        self.stride = _pair(stride)
        self.padding = _pair(padding)
        self.dilation = dilation
        self.groups = groups
        self.padding_mode = padding_mode
        self.overflow_rate = overflow_rate

        kh, kw = _pair(kernel_size)
        cs = in_channels // groups
        og = out_channels // groups
        K = kh * kw * cs
        wkey, bkey = jax.random.split(key)
        # deterministic synthetic init (torch module leaves the Tensor uninitialized)
        self.weight = 0.1 * jax.random.normal(
            wkey, (out_channels, cs, kh, kw), jnp.float32)
        self.bias = (0.1 * jax.random.normal(bkey, (out_channels,), jnp.float32)
                     if bias else None)

        self._og = og
        self._K = K
        # Lane-dense output tiles; for wide per-group O prefer full 256-wide
        # MXU passes on v6e/v7x.
        self._O_pad = _round_up(og, 256) if og >= 256 else _round_up(og, 128)
        self._O_c = _round_up(og, 8)             # sublane-aligned quant weight
        # Calibration K tiling (only kicks in for large K).
        self._tk = K if K <= _K_TILE else _K_TILE
        self._K_pad = _round_up(K, self._tk)

        # Cached, pre-flattened / padded weights & bias — no per-forward HBM
        # transposes.  K ordering = (kh, kw, c) to match _im2col_grouped.
        w_flat = jnp.transpose(
            self.weight.reshape(groups, og, cs, kh, kw),
            (0, 1, 3, 4, 2)).reshape(groups, og, K)               # (G, O_g, K)
        self._w_quant = jnp.pad(w_flat, ((0, 0), (0, self._O_c - og), (0, 0)))
        w_cal = jnp.pad(jnp.transpose(w_flat, (0, 2, 1)),
                        ((0, 0), (0, self._K_pad - K), (0, self._O_pad - og)))
        self._w_cal = w_cal.astype(jnp.bfloat16)                  # (G, K_pad, O_pad)
        b = self.bias if bias else jnp.zeros((out_channels,), jnp.float32)
        self._b_pad = jnp.pad(b.reshape(groups, 1, og),
                              ((0, 0), (0, 0), (0, self._O_pad - og)))
        # Pre-scaled (integer-domain) quant params, cached per sf.
        self._wq_sf = None
        self._wq_scaled = None
        self._bq_scaled = None

    # -- helpers -------------------------------------------------------------
    def _quant_params(self):
        if self.bits == 1:                      # sign-based path: scale irrelevant
            return self._w_quant, self._b_pad
        if self._wq_sf != self.sf:
            scale = (2.0 ** (self.bits - 1)) / (2.0 ** self.sf)  # exact power of 2
            self._wq_scaled = self._w_quant * jnp.float32(scale)
            self._bq_scaled = self._b_pad * jnp.float32(scale)
            self._wq_sf = self.sf
        return self._wq_scaled, self._bq_scaled

    @staticmethod
    def _pick_tm(tm, M, G):
        # v7x has 2 TensorCores; make sure the "parallel" grid has >= 2 steps.
        if G * (-(-M // tm)) < 2 and M > 8:
            tm = max(8, _round_up(-(-M // 2), 8))
        return tm

    def _assemble(self, out, B, out_h, out_w):
        G, og = self.groups, self._og
        out = out[:, :, :og]                                      # (G, M, og)
        out = out.reshape(G, B, out_h, out_w, og)
        out = jnp.transpose(out, (1, 0, 4, 2, 3))
        return out.reshape(B, self.out_channels, out_h, out_w)

    def _conv_groups(self, x, quantized):
        if self.padding_mode == 'circular':
            raise NameError('Conv2dQuant does not support circular padding')
        B = x.shape[0]
        kh, kw = _pair(self.kernel_size)
        has_bias = self.bias is not None
        dtype = jnp.float32 if quantized else jnp.bfloat16
        A, out_h, out_w = _im2col_grouped(x, kh, kw, self.stride, self.padding,
                                          _pair(self.dilation), self.groups, dtype)
        G, M, K = A.shape

        if quantized:
            tm = min(128, _round_up(M, 8))       # VALU-bound path
            while tm > 8 and tm * K * 4 > (4 << 20):     # bound the (tm,K) tile
                tm = max(8, _round_up(tm // 2, 8))
            tm = self._pick_tm(tm, M, G)
            M_pad = _round_up(M, tm)
            if M_pad > M:
                A = jnp.pad(A, ((0, 0), (0, M_pad - M), (0, 0)))
            w_q, b_q = self._quant_params()
            out = _conv_pallas_quant(A, w_q, b_q, bits=self.bits, sf=self.sf,
                                     has_bias=has_bias, tm=tm, og=self._og)
        else:
            tm = min(512, _round_up(M, 8))       # MXU / mem-bound path
            tm = self._pick_tm(tm, M, G)
            M_pad = _round_up(M, tm)
            pads = ((0, 0), (0, M_pad - M), (0, self._K_pad - K))
            if M_pad > M or self._K_pad > K:
                A = jnp.pad(A, pads)
            out = _conv_pallas_cal(A, self._w_cal, self._b_pad,
                                   has_bias=has_bias, tm=tm, tk=self._tk)

        out = out[:, :M, :]
        return self._assemble(out, B, out_h, out_w)

    @property
    def counter(self):
        return self._counter

    def __call__(self, x):
        if self._counter > 0:
            self._counter -= 1
            out = self._conv_groups(x, quantized=False)
            sf_new = get_scalling_factor(out, self.overflow_rate)
            self.sf = max(self.sf, sf_new) if self.sf is not None else sf_new
            return out
        else:
            return self._conv_groups(x, quantized=True)


if __name__ == "__main__":
    key = jax.random.PRNGKey(0)
    kx, km, kg = jax.random.split(key, 3)
    x = jax.random.normal(kx, (2, 4, 16, 16), jnp.float32)

    mod = Conv2dQuant(in_channels=4, out_channels=8, kernel_size=3, bits=8,
                      stride=1, padding=1, groups=1, bias=True,
                      overflow_rate=0.0, counter=1, key=km)

    # ---- Pass 1: calibration path (bf16 MXU matmul via Pallas), sets sf. ----
    y0 = jax.block_until_ready(mod(x))
    assert y0.shape == (2, 8, 16, 16)
    xb = x.astype(jnp.bfloat16).astype(jnp.float32)
    wb = mod.weight.astype(jnp.bfloat16).astype(jnp.float32)
    ref0 = jax.lax.conv_general_dilated(
        xb, wb, window_strides=(1, 1), padding=((1, 1), (1, 1)),
        dimension_numbers=('NCHW', 'OIHW', 'NCHW')) + mod.bias.reshape(1, -1, 1, 1)
    assert jnp.allclose(y0, ref0, atol=2e-3, rtol=2e-3), \
        float(jnp.max(jnp.abs(y0 - ref0)))

    # ---- Pass 2: quantized path (per-product quantize -> sum -> quantize
    #              -> +bias -> quantize), checked against a pure-JAX reference.
    y1 = jax.block_until_ready(mod(x))
    assert y1.shape == (2, 8, 16, 16)
    assert bool(jnp.all(jnp.isfinite(y1)))
    A, oh, ow = _im2col_grouped(x, 3, 3, (1, 1), (1, 1), (1, 1), 1, jnp.float32)
    wf = jnp.transpose(mod.weight, (0, 2, 3, 1)).reshape(8, -1)
    s = _quantize(jnp.sum(_quantize(A[0][:, None, :] * wf[None, :, :],
                                    mod.sf, mod.bits), axis=-1),
                  mod.sf, mod.bits)
    s = _quantize(s + mod.bias[None, :], mod.sf, mod.bits)
    ref1 = s.reshape(2, 16, 16, 8).transpose(0, 3, 1, 2)
    step = (2.0 ** mod.sf) / (2.0 ** (mod.bits - 1))
    assert jnp.allclose(y1, ref1, atol=step * 1.001 + 1e-6), \
        float(jnp.max(jnp.abs(y1 - ref1)))

    # ---- Grouped conv sanity check (calibration path, groups=2). ----
    mod2 = Conv2dQuant(in_channels=4, out_channels=8, kernel_size=3, bits=8,
                       stride=1, padding=1, groups=2, bias=True,
                       overflow_rate=0.0, counter=1, key=kg)
    y2 = jax.block_until_ready(mod2(x))
    assert y2.shape == (2, 8, 16, 16)
    ref2 = jax.lax.conv_general_dilated(
        xb, mod2.weight.astype(jnp.bfloat16).astype(jnp.float32),
        window_strides=(1, 1), padding=((1, 1), (1, 1)),
        feature_group_count=2,
        dimension_numbers=('NCHW', 'OIHW', 'NCHW')) + mod2.bias.reshape(1, -1, 1, 1)
    assert jnp.allclose(y2, ref2, atol=2e-3, rtol=2e-3), \
        float(jnp.max(jnp.abs(y2 - ref2)))

    print("KERNEL_OK")
</pallas_src>

<mosaic_0001>
module attributes {stable_mosaic.version = 11 : i64} {
  func.func @_conv_matmul_kernel(%arg0: i32, %arg1: i32, %arg2: i32, %arg3: memref<1x256x36xbf16, #tpu.memory_space<vmem>>, %arg4: memref<1x36x128xbf16, #tpu.memory_space<vmem>>, %arg5: memref<1x1x128xf32, #tpu.memory_space<vmem>>, %arg6: memref<1x256x128xf32, #tpu.memory_space<vmem>>, %arg7: memref<256x128xf32, #tpu.memory_space<vmem>>) attributes {dimension_semantics = [#tpu.dimension_semantics<parallel>, #tpu.dimension_semantics<parallel>, #tpu.dimension_semantics<arbitrary>], iteration_bounds = array<i64: 1, 2, 1>, scalar_prefetch = 0 : i64, scratch_operands = 1 : i64, tpu.core_type = #tpu.core_type<tc>, window_params = [{transform_indices = @transform_0, window_bounds = array<i64: 1, 256, 36>}, {transform_indices = @transform_1, window_bounds = array<i64: 1, 36, 128>}, {transform_indices = @transform_2, window_bounds = array<i64: 1, 1, 128>}, {transform_indices = @transform_3, window_bounds = array<i64: 1, 256, 128>}]} {
    %c0_i32 = arith.constant 0 : i32
    %0 = arith.cmpi eq, %arg2, %c0_i32 : i32
    %1 = arith.extui %0 : i1 to i32
    %c0_i32_0 = arith.constant 0 : i32
    %2 = arith.cmpi ne, %1, %c0_i32_0 : i32
    scf.if %2 {
      %cst_12 = arith.constant 0.000000e+00 : f32
      %14 = vector.broadcast %cst_12 : f32 to vector<256x128xf32>
      %c0_13 = arith.constant 0 : index
      %c0_14 = arith.constant 0 : index
      %15 = vector.load %arg7[%c0_13, %c0_14] : memref<256x128xf32, #tpu.memory_space<vmem>>, vector<256x128xf32>
      tpu.vector_store %arg7[%c0_13, %c0_14], %14 {strides = array<i32>} : memref<256x128xf32, #tpu.memory_space<vmem>>, vector<256x128xf32>,
    } else {
    }
    %c0 = arith.constant 0 : index
    %c0_1 = arith.constant 0 : index
    %3 = vector.load %arg7[%c0, %c0_1] : memref<256x128xf32, #tpu.memory_space<vmem>>, vector<256x128xf32>
    %c0_2 = arith.constant 0 : index
    %c0_3 = arith.constant 0 : index
    %c0_4 = arith.constant 0 : index
    %4 = vector.load %arg3[%c0_2, %c0_3, %c0_4] : memref<1x256x36xbf16, #tpu.memory_space<vmem>>, vector<1x256x36xbf16>
    %5 = vector.shape_cast %4 : vector<1x256x36xbf16> to vector<256x36xbf16>
    %c0_5 = arith.constant 0 : index
    %c0_6 = arith.constant 0 : index
    %c0_7 = arith.constant 0 : index
    %6 = vector.load %arg4[%c0_5, %c0_6, %c0_7] : memref<1x36x128xbf16, #tpu.memory_space<vmem>>, vector<1x36x128xbf16>
    %7 = vector.shape_cast %6 : vector<1x36x128xbf16> to vector<36x128xbf16>
    %cst = arith.constant dense<0.000000e+00> : vector<256x128xf32>
    %8 = tpu.matmul %5, %7, %cst {dimension_numbers = #tpu.dot_dimension_numbers<[1], [0], [0], [1], [0, 0, 1, 1], [], []>} : vector<256x36xbf16>, vector<36x128xbf16>, vector<256x128xf32> -> vector<256x128xf32>
    %9 = arith.addf %3, %8 : vector<256x128xf32>
    %c0_8 = arith.constant 0 : index
    %c0_9 = arith.constant 0 : index
    %10 = vector.load %arg7[%c0_8, %c0_9] : memref<256x128xf32, #tpu.memory_space<vmem>>, vector<256x128xf32>
    tpu.vector_store %arg7[%c0_8, %c0_9], %9 {strides = array<i32>} : memref<256x128xf32, #tpu.memory_space<vmem>>, vector<256x128xf32>,
    %c0_i32_10 = arith.constant 0 : i32
    %11 = arith.cmpi eq, %arg2, %c0_i32_10 : i32
    %12 = arith.extui %11 : i1 to i32
    %c0_i32_11 = arith.constant 0 : i32
    %13 = arith.cmpi ne, %12, %c0_i32_11 : i32
    scf.if %13 {
      %c0_12 = arith.constant 0 : index
      %c0_13 = arith.constant 0 : index
      %14 = vector.load %arg7[%c0_12, %c0_13] : memref<256x128xf32, #tpu.memory_space<vmem>>, vector<256x128xf32>
      %c0_14 = arith.constant 0 : index
      %c0_15 = arith.constant 0 : index
      %c0_16 = arith.constant 0 : index
      %15 = vector.load %arg5[%c0_14, %c0_15, %c0_16] : memref<1x1x128xf32, #tpu.memory_space<vmem>>, vector<1x1x128xf32>
      %16 = vector.shape_cast %15 : vector<1x1x128xf32> to vector<1x128xf32>
      %17 = vector.broadcast %16 : vector<1x128xf32> to vector<256x128xf32>
      %18 = arith.addf %14, %17 : vector<256x128xf32>
      %c0_17 = arith.constant 0 : index
      %c0_18 = arith.constant 0 : index
      %c0_19 = arith.constant 0 : index
      %19 = vector.load %arg6[%c0_17, %c0_18, %c0_19] : memref<1x256x128xf32, #tpu.memory_space<vmem>>, vector<1x256x128xf32>
      %20 = vector.shape_cast %19 : vector<1x256x128xf32> to vector<256x128xf32>
      %21 = vector.shape_cast %18 : vector<256x128xf32> to vector<1x256x128xf32>
      tpu.vector_store %arg6[%c0_17, %c0_18, %c0_19], %21 {strides = array<i32>} : memref<1x256x128xf32, #tpu.memory_space<vmem>>, vector<1x256x128xf32>,
    } else {
    }
    return
  }
  func.func @transform_0(%arg0: i32, %arg1: i32, %arg2: i32) -> (i32, i32, i32) {
    %c0_i32 = arith.constant 0 : i32
    return %arg0, %arg1, %arg2 : i32, i32, i32
  }
  func.func @transform_1(%arg0: i32, %arg1: i32, %arg2: i32) -> (i32, i32, i32) {
    %c0_i32 = arith.constant 0 : i32
    %c0_i32_0 = arith.constant 0 : i32
    return %arg0, %arg2, %c0_i32 : i32, i32, i32
  }
  func.func @transform_2(%arg0: i32, %arg1: i32, %arg2: i32) -> (i32, i32, i32) {
    %c0_i32 = arith.constant 0 : i32
    %c0_i32_0 = arith.constant 0 : i32
    %c0_i32_1 = arith.constant 0 : i32
    return %arg0, %c0_i32, %c0_i32_0 : i32, i32, i32
  }
  func.func @transform_3(%arg0: i32, %arg1: i32, %arg2: i32) -> (i32, i32, i32) {
    %c0_i32 = arith.constant 0 : i32
    %c0_i32_0 = arith.constant 0 : i32
    return %arg0, %arg1, %c0_i32 : i32, i32, i32
  }
}

</mosaic_0001>

<llo_original>
// kernel: tpu_custom_call.1
$region0: #{tpu_custom_call.1}
  #allocation0 [shape = 'u32[]', space=smem, size = 0x4, offset = 0x4, fixed_abs, tag = 'smem constant byte address 0x4 - core index']
  #allocation1 [shape = 'u32[72,128]{1,0:T(1,128)}', space=vmem, size = 0x9000, scoped, tag = 'internal scratch']
  #allocation2 [shape = 'f32[256,128]{1,0:T(8,128)}', space=vmem, size = 0x20000, scoped, tag = 'scratch operand']
  %s0 = inlined_call_operand.vmem [shape: bf16[1,512,36], index: 0, kind: input, shape index: {}]
  %s1 = inlined_call_operand.vmem [shape: bf16[1,36,128], index: 1, kind: input, shape index: {}]
  %s2 = inlined_call_operand.vmem [shape: f32[1,1,128], index: 2, kind: input, shape index: {}]
  %s3 = inlined_call_operand.hbm [shape: f32[1,512,128], index: 3, kind: output, shape index: {}]
  %s4 = sld [smem:[#allocation0]]
  $region53: #{tpu_custom_call.1} parent=0
    _
  %s6 = ssub.s32 1, %s4
  %s7 = scalar_select 0, %s6, %s4
  $region1: #{tpu_custom_call.1} parent=0
    #allocation3 [shape = 'u8[262144]{0}', space=vmem, size = 0x40000, scoped, tag = 'output window, operand 0']
    #allocation4 [shape = 's32[2]{0}', space=sflag, size = 0x8, scoped, tag = 'scoped memory for tpu_custom_call.1']
    %8 = vsyncpa [#allocation4], 0
    %s9 = scalar_lea.sflag [#allocation4], 1
    %10 = vsyncpa %s9, 0
    loop: start=0, step=1, limit=4
    $region2: #{tpu_custom_call.1} parent=1 // loop_pre_header
      _
    $region3: #{tpu_custom_call.1} parent=1 // loop_header
      %s12 = sphi 0, %s16
      %p13 = scmp.ge.s32.totalorder %s12, 4
      %s19 = sphi 0, %s38
      %s20 = sphi 0, %s34
      %s21 = sphi 0, %s30
      %s22 = sphi 0, %s19
      %s23 = sphi 0, %s20
      %s24 = sphi 0, %s21
      %s25 = sphi 0, %s22
      %s26 = sphi 0, %s23
      %s27 = sphi 0, %s24
      %s45 = sphi 0, %s47
      %s48 = sphi 0, %s45
      %s49 = sphi 0, %s48
      %s65 = sphi 0, %s49
      %s73 = sphi 0, %s75
      %s76 = sphi 0, %s73
      %s77 = sphi 0, %s76
      %s93 = sphi 0, %s77
      %s99 = sphi 0, %s101
      %s102 = sphi 0, %s99
      %s103 = sphi 0, %s102
      %s119 = sphi 0, %s103
      %s127 = sphi 0, %s129
      %s130 = sphi 0, %s127
      %s131 = sphi 0, %s130
      %s147 = sphi 0, %s131
    $region4: #{tpu_custom_call.1} parent=1 // loop_header_branch
      %15 = sbr.rel (%p13) target = $region8
    $region5: #{tpu_custom_call.1} parent=1 // loop_body
      %s17 = ssub.s32 %s12, 1
      %s18 = ssub.s32 %s12, 2
      %s28 = sadd.s32 1, %s21
      %p29 = scmp.ge.s32.totalorder %s28, 1
      %s30 = scalar_select %p29, 0, %s28
      %s31 = sadd.s32 1, %s20
      %s32 = scalar_select %p29, %s31, %s20
      %p33 = scmp.ge.s32.totalorder %s32, 2
      %s34 = scalar_select %p33, 0, %s32
      %s35 = sadd.s32 1, %s19
      %s36 = scalar_select %p33, %s35, %s19
      %p37 = scmp.ge.s32.totalorder %s36, 1
      %s38 = scalar_select %p37, 0, %s36
      %s39 = ssub.s32 %s19, %s38
      %s40 = ssub.s32 %s20, %s34
      %s41 = sor.u32 %s39, %s40
      %s42 = ssub.s32 %s21, %s30
      %s43 = sor.u32 %s41, %s42
      %p44 = scmp.eq.s32.totalorder %s43, 0
      %s46 = sadd.s32 %s45, 1
      %s47 = scalar_select %p44, %s45, %s46
      %p50 = pneg %p44
      %p51 = scmp.eq.s32.totalorder %s12, 1
      %p52 = por %p50, %p51
      %p53 = scmp.ne.s32.totalorder %s45, %s48
      %p54 = scmp.eq.s32.totalorder %s12, 0
      %p55 = por %p53, %p54
      %p56 = scmp.ne.s32.totalorder %s45, %s48
      %p57 = scmp.eq.s32.totalorder %s17, 1
      %p58 = por %p56, %p57
      %p59 = scmp.ne.s32.totalorder %s48, %s49
      %p60 = scmp.eq.s32.totalorder %s17, 0
      %p61 = por %p59, %p60
      %p62 = scmp.ne.s32.totalorder %s48, %s49
      %p63 = scmp.eq.s32.totalorder %s18, 1
      %p64 = por %p62, %p63
      %p66 = scmp.ne.s32.totalorder %s49, %s65
      %p67 = scmp.eq.s32.totalorder %s18, 0
      %p68 = por %p66, %p67
      %s69 = ssub.s32 %s19, %s38
      %s70 = ssub.s32 %s21, %s30
      %s71 = sor.u32 %s69, %s70
      %p72 = scmp.eq.s32.totalorder %s71, 0
      %s74 = sadd.s32 %s73, 1
      %s75 = scalar_select %p72, %s73, %s74
      %p78 = pneg %p72
      %p79 = scmp.eq.s32.totalorder %s12, 1
      %p80 = por %p78, %p79
      %p81 = scmp.ne.s32.totalorder %s73, %s76
      %p82 = scmp.eq.s32.totalorder %s12, 0
      %p83 = por %p81, %p82
      %p84 = scmp.ne.s32.totalorder %s73, %s76
      %p85 = scmp.eq.s32.totalorder %s17, 1
      %p86 = por %p84, %p85
      %p87 = scmp.ne.s32.totalorder %s76, %s77
      %p88 = scmp.eq.s32.totalorder %s17, 0
      %p89 = por %p87, %p88
      %p90 = scmp.ne.s32.totalorder %s76, %s77
      %p91 = scmp.eq.s32.totalorder %s18, 1
      %p92 = por %p90, %p91
      %p94 = scmp.ne.s32.totalorder %s77, %s93
      %p95 = scmp.eq.s32.totalorder %s18, 0
      %p96 = por %p94, %p95
      %s97 = ssub.s32 %s19, %s38
      %p98 = scmp.eq.s32.totalorder %s97, 0
      %s100 = sadd.s32 %s99, 1
      %s101 = scalar_select %p98, %s99, %s100
      %p104 = pneg %p98
      %p105 = scmp.eq.s32.totalorder %s12, 1
      %p106 = por %p104, %p105
      %p107 = scmp.ne.s32.totalorder %s99, %s102
      %p108 = scmp.eq.s32.totalorder %s12, 0
      %p109 = por %p107, %p108
      %p110 = scmp.ne.s32.totalorder %s99, %s102
      %p111 = scmp.eq.s32.totalorder %s17, 1
      %p112 = por %p110, %p111
      %p113 = scmp.ne.s32.totalorder %s102, %s103
      %p114 = scmp.eq.s32.totalorder %s17, 0
      %p115 = por %p113, %p114
      %p116 = scmp.ne.s32.totalorder %s102, %s103
      %p117 = scmp.eq.s32.totalorder %s18, 1
      %p118 = por %p116, %p117
      %p120 = scmp.ne.s32.totalorder %s103, %s119
      %p121 = scmp.eq.s32.totalorder %s18, 0
      %p122 = por %p120, %p121
      %s123 = ssub.s32 %s19, %s38
      %s124 = ssub.s32 %s20, %s34
      %s125 = sor.u32 %s123, %s124
      %p126 = scmp.eq.s32.totalorder %s125, 0
      %s128 = sadd.s32 %s127, 1
      %s129 = scalar_select %p126, %s127, %s128
      %p132 = pneg %p126
      %p133 = scmp.eq.s32.totalorder %s12, 1
      %p134 = por %p132, %p133
      %p135 = scmp.ne.s32.totalorder %s127, %s130
      %p136 = scmp.eq.s32.totalorder %s12, 0
      %p137 = por %p135, %p136
      %p138 = scmp.ne.s32.totalorder %s127, %s130
      %p139 = scmp.eq.s32.totalorder %s17, 1
      %p140 = por %p138, %p139
      %p141 = scmp.ne.s32.totalorder %s130, %s131
      %p142 = scmp.eq.s32.totalorder %s17, 0
      %p143 = por %p141, %p142
      %p144 = scmp.ne.s32.totalorder %s130, %s131
      %p145 = scmp.eq.s32.totalorder %s18, 1
      %p146 = por %p144, %p145
      %p148 = scmp.ne.s32.totalorder %s131, %s147
      %p149 = scmp.eq.s32.totalorder %s18, 0
      %p150 = por %p148, %p149
      %p151 = scmp.le.s32.totalorder 1, %s12
      %p152 = scmp.lt.s32.totalorder %s12, 3
      %p153 = pnand %p151, %p152
      %p154 = pneg %p153
      // Predicated region
      $region9: #{tpu_custom_call.1} parent=5 // pred_check
        _
      $region10: #{tpu_custom_call.1} parent=5 // pred_check_branch
        %156 = sbr.rel (%p153) target = $region12
      $region11: #{tpu_custom_call.1} parent=5 // pred_region
        %s157 = ssub.s32 %s12, 1
        // Predicated region
        $region13: #{tpu_custom_call.1} parent=11 // pred_check
          %p158 = pneg %p89
        $region14: #{tpu_custom_call.1} parent=11 // pred_check_branch
          %160 = sbr.rel (%p158) target = $region16
        $region15: #{tpu_custom_call.1} parent=11 // pred_region
          %s161 = smul.u32 5, %s24
          %p162 = scmp.lt.s32.totalorder %s22, 0
          %s163 = scalar_select %p162, %s22, 0
          %p164 = scmp.lt.s32.totalorder %s161, 4
          %s165 = scalar_select %p164, %s161, 4
          %s166 = smul.addr %s163, 5
          %s167 = sadd.s32 %s165, %s166
          %s168 = smul.addr %s167, 4
          %s169 = scalar_lea.vmem %s1, %s168
          %s170 = smul.u32 5, %s24
        $region16: #{tpu_custom_call.1} parent=11 // pred_fallthru
          _
        // Predicated region
        $region17: #{tpu_custom_call.1} parent=11 // pred_check
          %p171 = pneg %p115
        $region18: #{tpu_custom_call.1} parent=11 // pred_check_branch
          %173 = sbr.rel (%p171) target = $region20
        $region19: #{tpu_custom_call.1} parent=11 // pred_region
          %p174 = scmp.lt.s32.totalorder %s22, 0
          %s175 = scalar_select %p174, %s22, 0
          %s176 = scalar_lea.vmem %s2, %s175
        $region20: #{tpu_custom_call.1} parent=11 // pred_fallthru
          _
      $region12: #{tpu_custom_call.1} parent=5 // pred_fallthru
        _
      %p177 = scmp.lt.s32.totalorder %s12, 2
      // Predicated region
      $region21: #{tpu_custom_call.1} parent=5 // pred_check
        %p178 = pneg %p177
      $region22: #{tpu_custom_call.1} parent=5 // pred_check_branch
        %180 = sbr.rel (%p178) target = $region24
      $region23: #{tpu_custom_call.1} parent=5 // pred_region
        // Predicated region
        $region25: #{tpu_custom_call.1} parent=23 // pred_check
          %p181 = pneg %p55
        $region26: #{tpu_custom_call.1} parent=23 // pred_check_branch
          %183 = sbr.rel (%p181) target = $region28
        $region27: #{tpu_custom_call.1} parent=23 // pred_region
          %s184 = smul.u32 32, %s20
          %p185 = scmp.lt.s32.totalorder %s19, 0
          %s186 = scalar_select %p185, %s19, 0
          %p187 = scmp.lt.s32.totalorder %s184, 63
          %s188 = scalar_select %p187, %s184, 63
          %p189 = scmp.lt.s32.totalorder %s21, 0
          %s190 = scalar_select %p189, %s21, 0
          %s191 = sadd.s32 %s190, %s188
          %s192 = smul.addr %s186, 64
          %s193 = sadd.s32 %s191, %s192
          %s194 = smul.addr %s193, 4
          %s195 = scalar_lea.vmem %s0, %s194
          %s196 = smul.u32 32, %s20
        $region28: #{tpu_custom_call.1} parent=23 // pred_fallthru
          _
      $region24: #{tpu_custom_call.1} parent=5 // pred_fallthru
        _
      %p197 = scmp.le.s32.totalorder 1, %s12
      %p198 = scmp.lt.s32.totalorder %s12, 3
      %p199 = pnand %p197, %p198
      %p200 = pneg %p199
      // Predicated region
      $region29: #{tpu_custom_call.1} parent=5 // pred_check
        _
      $region30: #{tpu_custom_call.1} parent=5 // pred_check_branch
        %202 = sbr.rel (%p199) target = $region32
      $region31: #{tpu_custom_call.1} parent=5 // pred_region
        %s203 = ssub.s32 %s12, 1
        %s204 = smul.u32 32, %s23
        %p205 = scmp.lt.s32.totalorder %s22, 0
        %s206 = scalar_select %p205, %s22, 0
        %p207 = scmp.lt.s32.totalorder %s204, 63
        %s208 = scalar_select %p207, %s204, 63
        %p209 = scmp.lt.s32.totalorder %s24, 0
        %s210 = scalar_select %p209, %s24, 0
        %s211 = sadd.s32 %s210, %s208
        %s212 = smul.addr %s206, 64
        %s213 = sadd.s32 %s211, %s212
        %s214 = smul.addr %s213, 4
        %s215 = scalar_lea.vmem %s0, %s214
        %p216 = pneg %p61
        %p217 = pneg %p58
        %s218 = smul.u32 5, %s24
        %p219 = scmp.lt.s32.totalorder %s22, 0
        %s220 = scalar_select %p219, %s22, 0
        %p221 = scmp.lt.s32.totalorder %s218, 4
        %s222 = scalar_select %p221, %s218, 4
        %s223 = smul.addr %s220, 5
        %s224 = sadd.s32 %s222, %s223
        %s225 = smul.addr %s224, 4
        %s226 = scalar_lea.vmem %s1, %s225
        %p227 = pneg %p89
        %p228 = pneg %p86
        %p229 = scmp.lt.s32.totalorder %s22, 0
        %s230 = scalar_select %p229, %s22, 0
        %s231 = scalar_lea.vmem %s2, %s230
        %p232 = pneg %p115
        %p233 = pneg %p112
        %p234 = pneg %p143
        %p235 = pneg %p140
        %s236 = sand.u32 %s130, 1
        %s237 = scalar_lea.sflag [#allocation4], %s236
        %s238 = sand.u32 %s130, 1
        %s239 = smul.addr %s238, 256
        %s240 = scalar_lea.vmem [#allocation3], %s239
        %s241 = smul.u32 32, %s23
        %p242 = scmp.lt.s32.totalorder %s22, 0
        %s243 = scalar_select %p242, %s22, 0
        %p244 = scmp.lt.s32.totalorder %s241, 63
        %s245 = scalar_select %p244, %s241, 63
        %p246 = scmp.lt.s32.totalorder %s24, 0
        %s247 = scalar_select %p246, %s24, 0
        %s248 = sadd.s32 %s247, %s245
        %s249 = smul.addr %s243, 64
        %s250 = sadd.s32 %s248, %s249
        %s251 = smul.addr %s250, 4
        %s252 = scalar_lea.vmem %s0, %s251
        %s253 = smul.u32 32, %s23
        %s254 = smul.u32 5, %s24
        %p255 = scmp.lt.s32.totalorder %s22, 0
        %s256 = scalar_select %p255, %s22, 0
        %p257 = scmp.lt.s32.totalorder %s254, 4
        %s258 = scalar_select %p257, %s254, 4
        %s259 = smul.addr %s256, 5
        %s260 = sadd.s32 %s258, %s259
        %s261 = smul.addr %s260, 4
        %s262 = scalar_lea.vmem %s1, %s261
        %s263 = smul.u32 5, %s24
        %p264 = scmp.lt.s32.totalorder %s22, 0
        %s265 = scalar_select %p264, %s22, 0
        %s266 = scalar_lea.vmem %s2, %s265
        %s267 = smul.u32 32, %s23
        %p269 = scmp.eq.s32.totalorder %s24, 0
        // Predicated region
        $region33: #{tpu_custom_call.1} parent=31 // pred_check
          %p270 = pneg %p269
        $region34: #{tpu_custom_call.1} parent=31 // pred_check_branch
          %272 = sbr.rel (%p270) target = $region36
        $region35: #{tpu_custom_call.1} parent=31 // pred_region
          %273 = vst [vmem:[#allocation2] sm:$0xff] 0.0
          %274 = vst [vmem:[#allocation2 + $0x8] sm:$0xff] 0.0
          %275 = vst [vmem:[#allocation2 + $0x10] sm:$0xff] 0.0
          %276 = vst [vmem:[#allocation2 + $0x18] sm:$0xff] 0.0
          %277 = vst [vmem:[#allocation2 + $0x20] sm:$0xff] 0.0
          %278 = vst [vmem:[#allocation2 + $0x28] sm:$0xff] 0.0
          %279 = vst [vmem:[#allocation2 + $0x30] sm:$0xff] 0.0
          %280 = vst [vmem:[#allocation2 + $0x38] sm:$0xff] 0.0
          %281 = vst [vmem:[#allocation2 + $0x40] sm:$0xff] 0.0
          %282 = vst [vmem:[#allocation2 + $0x48] sm:$0xff] 0.0
          %283 = vst [vmem:[#allocation2 + $0x50] sm:$0xff] 0.0
          %284 = vst [vmem:[#allocation2 + $0x58] sm:$0xff] 0.0
          %285 = vst [vmem:[#allocation2 + $0x60] sm:$0xff] 0.0
          %286 = vst [vmem:[#allocation2 + $0x68] sm:$0xff] 0.0
          %287 = vst [vmem:[#allocation2 + $0x70] sm:$0xff] 0.0
          %288 = vst [vmem:[#allocation2 + $0x78] sm:$0xff] 0.0
          %289 = vst [vmem:[#allocation2 + $0x80] sm:$0xff] 0.0
          %290 = vst [vmem:[#allocation2 + $0x88] sm:$0xff] 0.0
          %291 = vst [vmem:[#allocation2 + $0x90] sm:$0xff] 0.0
          %292 = vst [vmem:[#allocation2 + $0x98] sm:$0xff] 0.0
          %293 = vst [vmem:[#allocation2 + $0xa0] sm:$0xff] 0.0
          %294 = vst [vmem:[#allocation2 + $0xa8] sm:$0xff] 0.0
          %295 = vst [vmem:[#allocation2 + $0xb0] sm:$0xff] 0.0
          %296 = vst [vmem:[#allocation2 + $0xb8] sm:$0xff] 0.0
          %297 = vst [vmem:[#allocation2 + $0xc0] sm:$0xff] 0.0
          %298 = vst [vmem:[#allocation2 + $0xc8] sm:$0xff] 0.0
          %299 = vst [vmem:[#allocation2 + $0xd0] sm:$0xff] 0.0
          %300 = vst [vmem:[#allocation2 + $0xd8] sm:$0xff] 0.0
          %301 = vst [vmem:[#allocation2 + $0xe0] sm:$0xff] 0.0
          %302 = vst [vmem:[#allocation2 + $0xe8] sm:$0xff] 0.0
          %303 = vst [vmem:[#allocation2 + $0xf0] sm:$0xff] 0.0
          %304 = vst [vmem:[#allocation2 + $0xf8] sm:$0xff] 0.0
        $region36: #{tpu_custom_call.1} parent=31 // pred_fallthru
          _
        %v305 = vld [vmem:[#allocation2] sm:$0xff]
        %v306 = vld [vmem:[#allocation2 + $0x8] sm:$0xff]
        %v307 = vld [vmem:[#allocation2 + $0x10] sm:$0xff]
        %v308 = vld [vmem:[#allocation2 + $0x18] sm:$0xff]
        %v309 = vld [vmem:[#allocation2 + $0x20] sm:$0xff]
        %v310 = vld [vmem:[#allocation2 + $0x28] sm:$0xff]
        %v311 = vld [vmem:[#allocation2 + $0x30] sm:$0xff]
        %v312 = vld [vmem:[#allocation2 + $0x38] sm:$0xff]
        %v313 = vld [vmem:[#allocation2 + $0x40] sm:$0xff]
        %v314 = vld [vmem:[#allocation2 + $0x48] sm:$0xff]
        %v315 = vld [vmem:[#allocation2 + $0x50] sm:$0xff]
        %v316 = vld [vmem:[#allocation2 + $0x58] sm:$0xff]
        %v317 = vld [vmem:[#allocation2 + $0x60] sm:$0xff]
        %v318 = vld [vmem:[#allocation2 + $0x68] sm:$0xff]
        %v319 = vld [vmem:[#allocation2 + $0x70] sm:$0xff]
        %v320 = vld [vmem:[#allocation2 + $0x78] sm:$0xff]
        %v321 = vld [vmem:[#allocation2 + $0x80] sm:$0xff]
        %v322 = vld [vmem:[#allocation2 + $0x88] sm:$0xff]
        %v323 = vld [vmem:[#allocation2 + $0x90] sm:$0xff]
        %v324 = vld [vmem:[#allocation2 + $0x98] sm:$0xff]
        %v325 = vld [vmem:[#allocation2 + $0xa0] sm:$0xff]
        %v326 = vld [vmem:[#allocation2 + $0xa8] sm:$0xff]
        %v327 = vld [vmem:[#allocation2 + $0xb0] sm:$0xff]
        %v328 = vld [vmem:[#allocation2 + $0xb8] sm:$0xff]
        %v329 = vld [vmem:[#allocation2 + $0xc0] sm:$0xff]
        %v330 = vld [vmem:[#allocation2 + $0xc8] sm:$0xff]
        %v331 = vld [vmem:[#allocation2 + $0xd0] sm:$0xff]
        %v332 = vld [vmem:[#allocation2 + $0xd8] sm:$0xff]
        %v333 = vld [vmem:[#allocation2 + $0xe0] sm:$0xff]
        %v334 = vld [vmem:[#allocation2 + $0xe8] sm:$0xff]
        %v335 = vld [vmem:[#allocation2 + $0xf0] sm:$0xff]
        %v336 = vld [vmem:[#allocation2 + $0xf8] sm:$0xff]
        %v337 = vld [vmem:[%s252] sm:$0xf]
        %v338 = vld [vmem:[%s252 + $0x4] sm:$0xf]
        %v339 = vld [vmem:[%s252 + $0x8] sm:$0xf]
        %v340 = vld [vmem:[%s252 + $0xc] sm:$0xf]
        %v341 = vld [vmem:[%s252 + $0x10] sm:$0xf]
        %v342 = vld [vmem:[%s252 + $0x14] sm:$0xf]
        %v343 = vld [vmem:[%s252 + $0x18] sm:$0xf]
        %v344 = vld [vmem:[%s252 + $0x1c] sm:$0xf]
        %v345 = vld [vmem:[%s252 + $0x20] sm:$0xf]
        %v346 = vld [vmem:[%s252 + $0x24] sm:$0xf]
        %v347 = vld [vmem:[%s252 + $0x28] sm:$0xf]
        %v348 = vld [vmem:[%s252 + $0x2c] sm:$0xf]
        %v349 = vld [vmem:[%s252 + $0x30] sm:$0xf]
        %v350 = vld [vmem:[%s252 + $0x34] sm:$0xf]
        %v351 = vld [vmem:[%s252 + $0x38] sm:$0xf]
        %v352 = vld [vmem:[%s252 + $0x3c] sm:$0xf]
        %v353 = vld [vmem:[%s252 + $0x40] sm:$0xf]
        %v354 = vld [vmem:[%s252 + $0x44] sm:$0xf]
        %v355 = vld [vmem:[%s252 + $0x48] sm:$0xf]
        %v356 = vld [vmem:[%s252 + $0x4c] sm:$0xf]
        %v357 = vld [vmem:[%s252 + $0x50] sm:$0xf]
        %v358 = vld [vmem:[%s252 + $0x54] sm:$0xf]
        %v359 = vld [vmem:[%s252 + $0x58] sm:$0xf]
        %v360 = vld [vmem:[%s252 + $0x5c] sm:$0xf]
        %v361 = vld [vmem:[%s252 + $0x60] sm:$0xf]
        %v362 = vld [vmem:[%s252 + $0x64] sm:$0xf]
        %v363 = vld [vmem:[%s252 + $0x68] sm:$0xf]
        %v364 = vld [vmem:[%s252 + $0x6c] sm:$0xf]
        %v365 = vld [vmem:[%s252 + $0x70] sm:$0xf]
        %v366 = vld [vmem:[%s252 + $0x74] sm:$0xf]
        %v367 = vld [vmem:[%s252 + $0x78] sm:$0xf]
        %v368 = vld [vmem:[%s252 + $0x7c] sm:$0xf]
        %v369 = vld [vmem:[%s262] sm:$0xf]
        %v370 = vld [vmem:[%s262 + $0x4] sm:$0xf]
        %v371 = vld [vmem:[%s262 + $0x8] sm:$0xf]
        %v372 = vld [vmem:[%s262 + $0xc] sm:$0xf]
        %v373 = vld [vmem:[%s262 + $0x10] sm:$0x3]
        %v406 = vunpack.c.l.b16 %v337
        %v407 = vunpack.c.l.b16 %v338
        %v408 = vunpack.c.l.b16 %v339
        %v409 = vunpack.c.l.b16 %v340
        %v410 = vunpack.c.l.b16 %v341
        %v411 = vunpack.c.l.b16 %v342
        %v412 = vunpack.c.l.b16 %v343
        %v413 = vunpack.c.l.b16 %v344
        %v414 = vunpack.c.l.b16 %v345
        %v415 = vunpack.c.l.b16 %v346
        %v416 = vunpack.c.l.b16 %v347
        %v417 = vunpack.c.l.b16 %v348
        %v418 = vunpack.c.l.b16 %v349
        %v419 = vunpack.c.l.b16 %v350
        %v420 = vunpack.c.l.b16 %v351
        %v421 = vunpack.c.l.b16 %v352
        %v422 = vunpack.c.l.b16 %v353
        %v423 = vunpack.c.l.b16 %v354
        %v424 = vunpack.c.l.b16 %v355
        %v425 = vunpack.c.l.b16 %v356
        %v426 = vunpack.c.l.b16 %v357
        %v427 = vunpack.c.l.b16 %v358
        %v428 = vunpack.c.l.b16 %v359
        %v429 = vunpack.c.l.b16 %v360
        %v430 = vunpack.c.l.b16 %v361
        %v431 = vunpack.c.l.b16 %v362
        %v432 = vunpack.c.l.b16 %v363
        %v433 = vunpack.c.l.b16 %v364
        %v434 = vunpack.c.l.b16 %v365
        %v435 = vunpack.c.l.b16 %v366
        %v436 = vunpack.c.l.b16 %v367
        %v437 = vunpack.c.l.b16 %v368
        %v438 = vpack.c.b16 %v407, %v406
        %v439 = vpack.c.b16 %v409, %v408
        %v440 = vpack.c.b16 %v411, %v410
        %v441 = vpack.c.b16 %v413, %v412
        %v442 = vpack.c.b16 %v415, %v414
        %v443 = vpack.c.b16 %v417, %v416
        %v444 = vpack.c.b16 %v419, %v418
        %v445 = vpack.c.b16 %v421, %v420
        %v446 = vpack.c.b16 %v423, %v422
        %v447 = vpack.c.b16 %v425, %v424
        %v448 = vpack.c.b16 %v427, %v426
        %v449 = vpack.c.b16 %v429, %v428
        %v450 = vpack.c.b16 %v431, %v430
        %v451 = vpack.c.b16 %v433, %v432
        %v452 = vpack.c.b16 %v435, %v434
        %v453 = vpack.c.b16 %v437, %v436
        %v459 = vunpack.c.l.b16 %v369
        %v460 = vunpack.c.l.b16 %v370
        %v461 = vunpack.c.l.b16 %v371
        %v462 = vunpack.c.l.b16 %v372
        %v463 = vunpack.c.l.b16 %v373
        %v464 = vpack.c.b16 %v460, %v459
        %v465 = vpack.c.b16 %v462, %v461
        %v466 = vpack.c.b16 %v463, %v463
        %vm469 = vcmask 293888
        %v471 = vsel %vm469, %v438, 0
        %v474 = vsel %vm469, %v439, 0
        %v477 = vsel %vm469, %v440, 0
        %v480 = vsel %vm469, %v441, 0
        %v483 = vsel %vm469, %v442, 0
        %v486 = vsel %vm469, %v443, 0
        %v489 = vsel %vm469, %v444, 0
        %v492 = vsel %vm469, %v445, 0
        %v495 = vsel %vm469, %v446, 0
        %v498 = vsel %vm469, %v447, 0
        %v501 = vsel %vm469, %v448, 0
        %v504 = vsel %vm469, %v449, 0
        %v507 = vsel %vm469, %v450, 0
        %v510 = vsel %vm469, %v451, 0
        %v513 = vsel %vm469, %v452, 0
        %v516 = vsel %vm469, %v453, 0
        %vm518 = vcmask 1041408
        %v520 = vsel %vm518, %v466, 0
        %522 = vmatpush.bf16.msra.mxu0 0
        %523 = vmatpush.bf16.msra.mxu0 0
        %524 = vmatpush.bf16.msra.mxu0 0
        %525 = vmatpush.bf16.msra.mxu0 0
        %526 = vmatpush.bf16.msra.mxu0 0
        %527 = vmatpush.bf16.msra.mxu0 %v520
        %528 = vmatpush.bf16.msra.mxu0 %v465
        %529 = vmatpush.bf16.msra.mxu0 %v464
        %530 = vmatmul.bf16.gmra.mxu0 %v471
        %v531 = vpop.f32.mrf.mxu0
        %v532 = vadd.f32 0.0, %v531
        %v533 = vpop.f32.mrf.mxu0
        %v534 = vadd.f32 0.0, %v533
        %535 = vmatmul.bf16.gmra.mxu0 %v474
        %v536 = vpop.f32.mrf.mxu0
        %v537 = vadd.f32 0.0, %v536
        %v538 = vpop.f32.mrf.mxu0
        %v539 = vadd.f32 0.0, %v538
        %540 = vmatmul.bf16.gmra.mxu0 %v477
        %v541 = vpop.f32.mrf.mxu0
        %v542 = vadd.f32 0.0, %v541
        %v543 = vpop.f32.mrf.mxu0
        %v544 = vadd.f32 0.0, %v543
        %545 = vmatmul.bf16.gmra.mxu0 %v480
        %v546 = vpop.f32.mrf.mxu0
        %v547 = vadd.f32 0.0, %v546
        %v548 = vpop.f32.mrf.mxu0
        %v549 = vadd.f32 0.0, %v548
        %550 = vmatmul.bf16.gmra.mxu0 %v483
        %v551 = vpop.f32.mrf.mxu0
        %v552 = vadd.f32 0.0, %v551
        %v553 = vpop.f32.mrf.mxu0
        %v554 = vadd.f32 0.0, %v553
        %555 = vmatmul.bf16.gmra.mxu0 %v486
        %v556 = vpop.f32.mrf.mxu0
        %v557 = vadd.f32 0.0, %v556
        %v558 = vpop.f32.mrf.mxu0
        %v559 = vadd.f32 0.0, %v558
        %560 = vmatmul.bf16.gmra.mxu0 %v489
        %v561 = vpop.f32.mrf.mxu0
        %v562 = vadd.f32 0.0, %v561
        %v563 = vpop.f32.mrf.mxu0
        %v564 = vadd.f32 0.0, %v563
        %565 = vmatmul.bf16.gmra.mxu0 %v492
        %v566 = vpop.f32.mrf.mxu0
        %v567 = vadd.f32 0.0, %v566
        %v568 = vpop.f32.mrf.mxu0
        %v569 = vadd.f32 0.0, %v568
        %570 = vmatmul.bf16.gmra.mxu0 %v495
        %v571 = vpop.f32.mrf.mxu0
        %v572 = vadd.f32 0.0, %v571
        %v573 = vpop.f32.mrf.mxu0
        %v574 = vadd.f32 0.0, %v573
        %575 = vmatmul.bf16.gmra.mxu0 %v498
        %v576 = vpop.f32.mrf.mxu0
        %v577 = vadd.f32 0.0, %v576
        %v578 = vpop.f32.mrf.mxu0
        %v579 = vadd.f32 0.0, %v578
        %580 = vmatmul.bf16.gmra.mxu0 %v501
        %v581 = vpop.f32.mrf.mxu0
        %v582 = vadd.f32 0.0, %v581
        %v583 = vpop.f32.mrf.mxu0
        %v584 = vadd.f32 0.0, %v583
        %585 = vmatmul.bf16.gmra.mxu0 %v504
        %v586 = vpop.f32.mrf.mxu0
        %v587 = vadd.f32 0.0, %v586
        %v588 = vpop.f32.mrf.mxu0
        %v589 = vadd.f32 0.0, %v588
        %590 = vmatmul.bf16.gmra.mxu0 %v507
        %v591 = vpop.f32.mrf.mxu0
        %v592 = vadd.f32 0.0, %v591
        %v593 = vpop.f32.mrf.mxu0
        %v594 = vadd.f32 0.0, %v593
        %595 = vmatmul.bf16.gmra.mxu0 %v510
        %v596 = vpop.f32.mrf.mxu0
        %v597 = vadd.f32 0.0, %v596
        %v598 = vpop.f32.mrf.mxu0
        %v599 = vadd.f32 0.0, %v598
        %600 = vmatmul.bf16.gmra.mxu0 %v513
        %v601 = vpop.f32.mrf.mxu0
        %v602 = vadd.f32 0.0, %v601
        %v603 = vpop.f32.mrf.mxu0
        %v604 = vadd.f32 0.0, %v603
        %605 = vmatmul.bf16.gmra.mxu0 %v516
        %v606 = vpop.f32.mrf.mxu0
        %v607 = vadd.f32 0.0, %v606
        %v608 = vpop.f32.mrf.mxu0
        %v609 = vadd.f32 0.0, %v608
        %610 = vdwg.mxu0
        %v611 = vadd.f32 %v305, %v532
        %v612 = vadd.f32 %v306, %v534
        %v613 = vadd.f32 %v307, %v537
        %v614 = vadd.f32 %v308, %v539
        %v615 = vadd.f32 %v309, %v542
        %v616 = vadd.f32 %v310, %v544
        %v617 = vadd.f32 %v311, %v547
        %v618 = vadd.f32 %v312, %v549
        %v619 = vadd.f32 %v313, %v552
        %v620 = vadd.f32 %v314, %v554
        %v621 = vadd.f32 %v315, %v557
        %v622 = vadd.f32 %v316, %v559
        %v623 = vadd.f32 %v317, %v562
        %v624 = vadd.f32 %v318, %v564
        %v625 = vadd.f32 %v319, %v567
        %v626 = vadd.f32 %v320, %v569
        %v627 = vadd.f32 %v321, %v572
        %v628 = vadd.f32 %v322, %v574
        %v629 = vadd.f32 %v323, %v577
        %v630 = vadd.f32 %v324, %v579
        %v631 = vadd.f32 %v325, %v582
        %v632 = vadd.f32 %v326, %v584
        %v633 = vadd.f32 %v327, %v587
        %v634 = vadd.f32 %v328, %v589
        %v635 = vadd.f32 %v329, %v592
        %v636 = vadd.f32 %v330, %v594
        %v637 = vadd.f32 %v331, %v597
        %v638 = vadd.f32 %v332, %v599
        %v639 = vadd.f32 %v333, %v602
        %v640 = vadd.f32 %v334, %v604
        %v641 = vadd.f32 %v335, %v607
        %v642 = vadd.f32 %v336, %v609
        %643 = vst [vmem:[#allocation2] sm:$0xff] %v611
        %644 = vst [vmem:[#allocation2 + $0x8] sm:$0xff] %v612
        %645 = vst [vmem:[#allocation2 + $0x10] sm:$0xff] %v613
        %646 = vst [vmem:[#allocation2 + $0x18] sm:$0xff] %v614
        %647 = vst [vmem:[#allocation2 + $0x20] sm:$0xff] %v615
        %648 = vst [vmem:[#allocation2 + $0x28] sm:$0xff] %v616
        %649 = vst [vmem:[#allocation2 + $0x30] sm:$0xff] %v617
        %650 = vst [vmem:[#allocation2 + $0x38] sm:$0xff] %v618
        %651 = vst [vmem:[#allocation2 + $0x40] sm:$0xff] %v619
        %652 = vst [vmem:[#allocation2 + $0x48] sm:$0xff] %v620
        %653 = vst [vmem:[#allocation2 + $0x50] sm:$0xff] %v621
        %654 = vst [vmem:[#allocation2 + $0x58] sm:$0xff] %v622
        %655 = vst [vmem:[#allocation2 + $0x60] sm:$0xff] %v623
        %656 = vst [vmem:[#allocation2 + $0x68] sm:$0xff] %v624
        %657 = vst [vmem:[#allocation2 + $0x70] sm:$0xff] %v625
        %658 = vst [vmem:[#allocation2 + $0x78] sm:$0xff] %v626
        %659 = vst [vmem:[#allocation2 + $0x80] sm:$0xff] %v627
        %660 = vst [vmem:[#allocation2 + $0x88] sm:$0xff] %v628
        %661 = vst [vmem:[#allocation2 + $0x90] sm:$0xff] %v629
        %662 = vst [vmem:[#allocation2 + $0x98] sm:$0xff] %v630
        %663 = vst [vmem:[#allocation2 + $0xa0] sm:$0xff] %v631
        %664 = vst [vmem:[#allocation2 + $0xa8] sm:$0xff] %v632
        %665 = vst [vmem:[#allocation2 + $0xb0] sm:$0xff] %v633
        %666 = vst [vmem:[#allocation2 + $0xb8] sm:$0xff] %v634
        %667 = vst [vmem:[#allocation2 + $0xc0] sm:$0xff] %v635
        %668 = vst [vmem:[#allocation2 + $0xc8] sm:$0xff] %v636
        %669 = vst [vmem:[#allocation2 + $0xd0] sm:$0xff] %v637
        %670 = vst [vmem:[#allocation2 + $0xd8] sm:$0xff] %v638
        %671 = vst [vmem:[#allocation2 + $0xe0] sm:$0xff] %v639
        %672 = vst [vmem:[#allocation2 + $0xe8] sm:$0xff] %v640
        %673 = vst [vmem:[#allocation2 + $0xf0] sm:$0xff] %v641
        %674 = vst [vmem:[#allocation2 + $0xf8] sm:$0xff] %v642
        // Predicated region
        $region37: #{tpu_custom_call.1} parent=31 // pred_check
          %p675 = pneg %p269
        $region38: #{tpu_custom_call.1} parent=31 // pred_check_branch
          %677 = sbr.rel (%p675) target = $region40
        $region39: #{tpu_custom_call.1} parent=31 // pred_region
          %v678 = vld [vmem:[#allocation2] sm:$0xff]
          %v679 = vld [vmem:[#allocation2 + $0x8] sm:$0xff]
          %v680 = vld [vmem:[#allocation2 + $0x10] sm:$0xff]
          %v681 = vld [vmem:[#allocation2 + $0x18] sm:$0xff]
          %v682 = vld [vmem:[#allocation2 + $0x20] sm:$0xff]
          %v683 = vld [vmem:[#allocation2 + $0x28] sm:$0xff]
          %v684 = vld [vmem:[#allocation2 + $0x30] sm:$0xff]
          %v685 = vld [vmem:[#allocation2 + $0x38] sm:$0xff]
          %v686 = vld [vmem:[#allocation2 + $0x40] sm:$0xff]
          %v687 = vld [vmem:[#allocation2 + $0x48] sm:$0xff]
          %v688 = vld [vmem:[#allocation2 + $0x50] sm:$0xff]
          %v689 = vld [vmem:[#allocation2 + $0x58] sm:$0xff]
          %v690 = vld [vmem:[#allocation2 + $0x60] sm:$0xff]
          %v691 = vld [vmem:[#allocation2 + $0x68] sm:$0xff]
          %v692 = vld [vmem:[#allocation2 + $0x70] sm:$0xff]
          %v693 = vld [vmem:[#allocation2 + $0x78] sm:$0xff]
          %v694 = vld [vmem:[#allocation2 + $0x80] sm:$0xff]
          %v695 = vld [vmem:[#allocation2 + $0x88] sm:$0xff]
          %v696 = vld [vmem:[#allocation2 + $0x90] sm:$0xff]
          %v697 = vld [vmem:[#allocation2 + $0x98] sm:$0xff]
          %v698 = vld [vmem:[#allocation2 + $0xa0] sm:$0xff]
          %v699 = vld [vmem:[#allocation2 + $0xa8] sm:$0xff]
          %v700 = vld [vmem:[#allocation2 + $0xb0] sm:$0xff]
          %v701 = vld [vmem:[#allocation2 + $0xb8] sm:$0xff]
          %v702 = vld [vmem:[#allocation2 + $0xc0] sm:$0xff]
          %v703 = vld [vmem:[#allocation2 + $0xc8] sm:$0xff]
          %v704 = vld [vmem:[#allocation2 + $0xd0] sm:$0xff]
          %v705 = vld [vmem:[#allocation2 + $0xd8] sm:$0xff]
          %v706 = vld [vmem:[#allocation2 + $0xe0] sm:$0xff]
          %v707 = vld [vmem:[#allocation2 + $0xe8] sm:$0xff]
          %v708 = vld [vmem:[#allocation2 + $0xf0] sm:$0xff]
          %v709 = vld [vmem:[#allocation2 + $0xf8] sm:$0xff]
          %v710 = vld [vmem:[%s266] sm:$0x1]
          %v712 = vperm.slane %v710, 0
          %v714 = vadd.f32 %v678, %v712
          %v715 = vadd.f32 %v679, %v712
          %v716 = vadd.f32 %v680, %v712
          %v717 = vadd.f32 %v681, %v712
          %v718 = vadd.f32 %v682, %v712
          %v719 = vadd.f32 %v683, %v712
          %v720 = vadd.f32 %v684, %v712
          %v721 = vadd.f32 %v685, %v712
          %v722 = vadd.f32 %v686, %v712
          %v723 = vadd.f32 %v687, %v712
          %v724 = vadd.f32 %v688, %v712
          %v725 = vadd.f32 %v689, %v712
          %v726 = vadd.f32 %v690, %v712
          %v727 = vadd.f32 %v691, %v712
          %v728 = vadd.f32 %v692, %v712
          %v729 = vadd.f32 %v693, %v712
          %v730 = vadd.f32 %v694, %v712
          %v731 = vadd.f32 %v695, %v712
          %v732 = vadd.f32 %v696, %v712
          %v733 = vadd.f32 %v697, %v712
          %v734 = vadd.f32 %v698, %v712
          %v735 = vadd.f32 %v699, %v712
          %v736 = vadd.f32 %v700, %v712
          %v737 = vadd.f32 %v701, %v712
          %v738 = vadd.f32 %v702, %v712
          %v739 = vadd.f32 %v703, %v712
          %v740 = vadd.f32 %v704, %v712
          %v741 = vadd.f32 %v705, %v712
          %v742 = vadd.f32 %v706, %v712
          %v743 = vadd.f32 %v707, %v712
          %v744 = vadd.f32 %v708, %v712
          %v745 = vadd.f32 %v709, %v712
          %746 = vst [vmem:[%s240] sm:$0xff] %v714
          %747 = vst [vmem:[%s240 + $0x8] sm:$0xff] %v715
          %748 = vst [vmem:[%s240 + $0x10] sm:$0xff] %v716
          %749 = vst [vmem:[%s240 + $0x18] sm:$0xff] %v717
          %750 = vst [vmem:[%s240 + $0x20] sm:$0xff] %v718
          %751 = vst [vmem:[%s240 + $0x28] sm:$0xff] %v719
          %752 = vst [vmem:[%s240 + $0x30] sm:$0xff] %v720
          %753 = vst [vmem:[%s240 + $0x38] sm:$0xff] %v721
          %754 = vst [vmem:[%s240 + $0x40] sm:$0xff] %v722
          %755 = vst [vmem:[%s240 + $0x48] sm:$0xff] %v723
          %756 = vst [vmem:[%s240 + $0x50] sm:$0xff] %v724
          %757 = vst [vmem:[%s240 + $0x58] sm:$0xff] %v725
          %758 = vst [vmem:[%s240 + $0x60] sm:$0xff] %v726
          %759 = vst [vmem:[%s240 + $0x68] sm:$0xff] %v727
          %760 = vst [vmem:[%s240 + $0x70] sm:$0xff] %v728
          %761 = vst [vmem:[%s240 + $0x78] sm:$0xff] %v729
          %762 = vst [vmem:[%s240 + $0x80] sm:$0xff] %v730
          %763 = vst [vmem:[%s240 + $0x88] sm:$0xff] %v731
          %764 = vst [vmem:[%s240 + $0x90] sm:$0xff] %v732
          %765 = vst [vmem:[%s240 + $0x98] sm:$0xff] %v733
          %766 = vst [vmem:[%s240 + $0xa0] sm:$0xff] %v734
          %767 = vst [vmem:[%s240 + $0xa8] sm:$0xff] %v735
          %768 = vst [vmem:[%s240 + $0xb0] sm:$0xff] %v736
          %769 = vst [vmem:[%s240 + $0xb8] sm:$0xff] %v737
          %770 = vst [vmem:[%s240 + $0xc0] sm:$0xff] %v738
          %771 = vst [vmem:[%s240 + $0xc8] sm:$0xff] %v739
          %772 = vst [vmem:[%s240 + $0xd0] sm:$0xff] %v740
          %773 = vst [vmem:[%s240 + $0xd8] sm:$0xff] %v741
          %774 = vst [vmem:[%s240 + $0xe0] sm:$0xff] %v742
          %775 = vst [vmem:[%s240 + $0xe8] sm:$0xff] %v743
          %776 = vst [vmem:[%s240 + $0xf0] sm:$0xff] %v744
          %777 = vst [vmem:[%s240 + $0xf8] sm:$0xff] %v745
        $region40: #{tpu_custom_call.1} parent=31 // pred_fallthru
          _
        %s778 = sand.u32 %s130, 1
        %s779 = scalar_lea.sflag [#allocation4], %s778
        %s780 = sand.u32 %s130, 1
        %s781 = smul.addr %s780, 256
        %s782 = scalar_lea.vmem [#allocation3], %s781
        // Predicated region
        $region41: #{tpu_custom_call.1} parent=31 // pred_check
          %p783 = pneg %p140
        $region42: #{tpu_custom_call.1} parent=31 // pred_check_branch
          %785 = sbr.rel (%p783) target = $region44
        $region43: #{tpu_custom_call.1} parent=31 // pred_region
          %s786 = smul.u32 32, %s23
          %788 = vsyncadd %s779, 0
          %s789 = smul.addr %s22, 64
          %s790 = sadd.s32 %s786, %s789
          %s791 = smul.addr %s790, 8
          %s792 = scalar_lea.hbm %s3, %s791
          %s793 = sshll.u32 %s782, 4
          %s794 = int_to_ptr.vmem [resolvable:$true] %s793
          %s795 = sshll.u32 %s792, 4
          %s796 = int_to_ptr.hbm [resolvable:$true] %s795
          %801 = dma.vmem_to_hbm [thread:$0]  %s794, 4096, %s796, %s779, 128, 128, 8
        $region44: #{tpu_custom_call.1} parent=31 // pred_fallthru
          _
      $region32: #{tpu_custom_call.1} parent=5 // pred_fallthru
        _
      %p802 = scmp.le.s32.totalorder 2, %s12
      // Predicated region
      $region45: #{tpu_custom_call.1} parent=5 // pred_check
        %p803 = pneg %p802
      $region46: #{tpu_custom_call.1} parent=5 // pred_check_branch
        %805 = sbr.rel (%p803) target = $region48
      $region47: #{tpu_custom_call.1} parent=5 // pred_region
        %s806 = ssub.s32 %s12, 2
        // Predicated region
        $region49: #{tpu_custom_call.1} parent=47 // pred_check
          %p807 = pneg %p146
        $region50: #{tpu_custom_call.1} parent=47 // pred_check_branch
          %809 = sbr.rel (%p807) target = $region52
        $region51: #{tpu_custom_call.1} parent=47 // pred_region
          %s810 = sand.u32 %s131, 1
          %s811 = scalar_lea.sflag [#allocation4], %s810
          %s812 = sand.u32 %s131, 1
          %s813 = smul.addr %s812, 256
          %s814 = scalar_lea.vmem [#allocation3], %s813
          %816 = dma.done %s811, 4096
        $region52: #{tpu_custom_call.1} parent=47 // pred_fallthru
          _
      $region48: #{tpu_custom_call.1} parent=5 // pred_fallthru
        _
    $region6: #{tpu_custom_call.1} parent=1 // loop_footer
      %s16 = sadd.s32 1, %s12
    $region7: #{tpu_custom_call.1} parent=1 // loop_footer_branch
      %11 = sbr.rel target = $region3
    $region8: #{tpu_custom_call.1} parent=1 // loop_exit
      _
    %817 = vsyncpa [#allocation4], 1
    %s818 = scalar_lea.sflag [#allocation4], 1
    %819 = vsyncpa %s818, 1

</llo_original>
